<compile_context>
chip_gen: v7x
topology: tpu7x:2x2x1
jax: 0.10.0
libtpu: 0.0.40
codegen_flags: <defaults>
</compile_context>

<pallas_src>
import functools

import numpy as np
import jax
import jax.numpy as jnp
from jax.experimental import pallas as pl
from jax.experimental.pallas import tpu as pltpu


# ----------------------------------------------------------------------------
# Pallas kernel: tiled matmul + folded-BN scale/bias + optional residual + ReLU
# ----------------------------------------------------------------------------
def _mm_bn_act_kernel(*refs, apply_relu, has_residual):
    if has_residual:
        a_ref, b_ref, scale_ref, bias_ref, res_ref, o_ref, acc_ref = refs
    else:
        a_ref, b_ref, scale_ref, bias_ref, o_ref, acc_ref = refs
        res_ref = None

    k = pl.program_id(2)

    @pl.when(k == 0)
    def _():
        acc_ref[...] = jnp.zeros_like(acc_ref)

    acc_ref[...] += jnp.dot(a_ref[...], b_ref[...],
                            preferred_element_type=jnp.float32)

    @pl.when(k == pl.num_programs(2) - 1)
    def _():
        y = acc_ref[...] * scale_ref[...] + bias_ref[...]
        if has_residual:
            y = y + res_ref[...].astype(jnp.float32)
        if apply_relu:
            y = jnp.maximum(y, 0.0)
        o_ref[...] = y.astype(o_ref.dtype)


def _round_up(x, m):
    return ((x + m - 1) // m) * m


def _choose_tiles(M, N, K):
    # M tile: multiple of 16 (bf16 sublane packing); keep >=2 blocks when possible
    # so the parallel (i,j) grid shards across both TensorCores on v7x.
    if M >= 1024:
        tm = 512
    elif M >= 512:
        tm = 256
    elif M >= 256:
        tm = 128
    elif M > 64:
        tm = _round_up((M + 1) // 2, 16)
    else:
        tm = _round_up(M, 16)
    # N tile: multiple of 128 lanes.
    if N >= 1024:
        tn = 512
    elif N >= 512:
        tn = 256
    elif N >= 256:
        tn = 128
    else:
        tn = _round_up(N, 128)
    # K tile: big for long-K (layer3/4, PSP bottleneck) to amortize grid overhead.
    if K >= 4096:
        tk = 1024
    elif K >= 1024:
        tk = 512
    else:
        tk = _round_up(K, 128)
    return tm, tn, tk


@functools.lru_cache(maxsize=None)
def _build_matmul(M_pad, K_pad, N_pad, tm, tn, tk, relu, has_res, out_dtype):
    kernel = functools.partial(_mm_bn_act_kernel,
                               apply_relu=relu, has_residual=has_res)
    in_specs = [
        pl.BlockSpec((tm, tk), lambda i, j, k: (i, k)),
        pl.BlockSpec((tk, tn), lambda i, j, k: (k, j)),
        pl.BlockSpec((1, tn), lambda i, j, k: (0, j)),
        pl.BlockSpec((1, tn), lambda i, j, k: (0, j)),
    ]
    if has_res:
        in_specs.append(pl.BlockSpec((tm, tn), lambda i, j, k: (i, j)))
    return pl.pallas_call(
        kernel,
        out_shape=jax.ShapeDtypeStruct((M_pad, N_pad), out_dtype),
        grid_spec=pltpu.PrefetchScalarGridSpec(
            num_scalar_prefetch=0,
            grid=(M_pad // tm, N_pad // tn, K_pad // tk),
            in_specs=in_specs,
            out_specs=pl.BlockSpec((tm, tn), lambda i, j, k: (i, j)),
            scratch_shapes=[pltpu.VMEM((tm, tn), jnp.float32)]),
        compiler_params=pltpu.CompilerParams(
            dimension_semantics=("parallel", "parallel", "arbitrary"),
            vmem_limit_bytes=64 * 1024 * 1024),
    )


def fused_matmul(a, b, scale=None, bias=None, relu=False, residual=None,
                 out_dtype=jnp.bfloat16, operand_dtype=jnp.bfloat16):
    """out = maybe_relu((a @ b) * scale + bias [+ residual])
       a:[M,K]  b:[K,N]  scale/bias:[N]  residual:[M,N]."""
    M, K = a.shape
    K2, N = b.shape
    assert K == K2
    a = a.astype(operand_dtype)
    b = b.astype(operand_dtype)
    if scale is None:
        scale = jnp.ones((N,), jnp.float32)
    if bias is None:
        bias = jnp.zeros((N,), jnp.float32)

    tm, tn, tk = _choose_tiles(M, N, K)
    M_pad, N_pad, K_pad = _round_up(M, tm), _round_up(N, tn), _round_up(K, tk)

    a_p = jnp.pad(a, ((0, M_pad - M), (0, K_pad - K)))
    b_p = jnp.pad(b, ((0, K_pad - K), (0, N_pad - N)))
    s_p = jnp.pad(scale.reshape(1, N).astype(jnp.float32), ((0, 0), (0, N_pad - N)))
    bi_p = jnp.pad(bias.reshape(1, N).astype(jnp.float32), ((0, 0), (0, N_pad - N)))

    has_res = residual is not None
    fn = _build_matmul(M_pad, K_pad, N_pad, tm, tn, tk,
                       bool(relu), has_res, np.dtype(out_dtype))
    if has_res:
        r_p = jnp.pad(residual.astype(jnp.bfloat16),
                      ((0, M_pad - M), (0, N_pad - N)))
        out = fn(a_p, b_p, s_p, bi_p, r_p)
    else:
        out = fn(a_p, b_p, s_p, bi_p)
    return out[:M, :N]


# ----------------------------------------------------------------------------
# Conv / BN / resize built on the Pallas matmul
# ----------------------------------------------------------------------------
def conv2d_bn(x, wmat, k, scale, bias, stride=1, padding=0, dilation=1,
              relu=False, residual=None, out_dtype=jnp.bfloat16):
    """x: NHWC, wmat: [k*k*Cin, Cout] (feature order ki,kj,c)."""
    N, H, W, C = x.shape
    Cout = wmat.shape[1]
    Ho = (H + 2 * padding - dilation * (k - 1) - 1) // stride + 1
    Wo = (W + 2 * padding - dilation * (k - 1) - 1) // stride + 1

    if k == 1 and padding == 0:
        xs = x[:, ::stride, ::stride, :]
        a = xs.reshape(N * Ho * Wo, C)
    else:
        xp = jnp.pad(x, ((0, 0), (padding, padding), (padding, padding), (0, 0)))
        cols = []
        for ki in range(k):
            for kj in range(k):
                sl = xp[:, ki * dilation: ki * dilation + (Ho - 1) * stride + 1: stride,
                        kj * dilation: kj * dilation + (Wo - 1) * stride + 1: stride, :]
                cols.append(sl)                          # each [N, Ho, Wo, C]
        a = jnp.concatenate(cols, axis=-1).reshape(N * Ho * Wo, k * k * C)

    res_flat = None
    if residual is not None:
        res_flat = residual.reshape(N * Ho * Wo, Cout)
    y = fused_matmul(a, wmat, scale, bias, relu=relu,
                     residual=res_flat, out_dtype=out_dtype)
    return y.reshape(N, Ho, Wo, Cout)


def cbr(p, x, stride=1, padding=0, dilation=1, relu=True,
        residual=None, out_dtype=jnp.bfloat16):
    cin = x.shape[-1]
    k = int(round((p['wmat'].shape[0] // cin) ** 0.5))
    return conv2d_bn(x, p['wmat'], k, p['scale'], p['bias'],
                     stride=stride, padding=padding, dilation=dilation,
                     relu=relu, residual=residual, out_dtype=out_dtype)


def _interp_matrix(out_size, in_size):
    """1-D bilinear matrix, PyTorch align_corners=True semantics."""
    M = np.zeros((out_size, in_size), np.float32)
    if out_size == 1:
        M[0, 0] = 1.0
    else:
        scale = (in_size - 1) / (out_size - 1)
        for i in range(out_size):
            src = i * scale
            i0 = min(int(np.floor(src)), in_size - 1)
            i1 = min(i0 + 1, in_size - 1)
            w = src - i0
            M[i, i0] += 1.0 - w
            M[i, i1] += w
    return M


def _pool_matrix(out_size, in_size):
    """1-D adaptive average pooling matrix (PyTorch AdaptiveAvgPool semantics)."""
    M = np.zeros((out_size, in_size), np.float32)
    for i in range(out_size):
        start = (i * in_size) // out_size
        end = -(-((i + 1) * in_size) // out_size)
        M[i, start:end] = 1.0 / (end - start)
    return M


def _is_identity(L):
    return L.shape[0] == L.shape[1] and bool(np.allclose(L, np.eye(L.shape[0])))


def _separable_apply(x, Lh, Lw, out_dtype):
    """out[n,:,:,c] = Lh @ x[n,:,:,c] @ Lw.T   without any HBM transposes.
    H-contraction: block-diag over batch (kron(I_N, Lh)).
    W-contraction: whichever of kron(Lw.T, I_C) (right) or kron(I_{N*Hout}, Lw)
    (left, block-diag) is smaller."""
    N, H, W, C = x.shape
    Hout, Wout = Lh.shape[0], Lw.shape[0]

    if _is_identity(Lh):
        t = x
    else:
        A1 = np.kron(np.eye(N, dtype=np.float32), Lh)          # [N*Hout, N*H]
        t = fused_matmul(jnp.asarray(A1), x.reshape(N * H, W * C),
                         out_dtype=jnp.bfloat16).reshape(N, Hout, W, C)

    if _is_identity(Lw):
        return t.astype(out_dtype)

    B = N * Hout
    if C <= B:
        M2 = np.kron(Lw.T, np.eye(C, dtype=np.float32))         # [W*C, Wout*C]
        z = fused_matmul(t.reshape(B, W * C), jnp.asarray(M2), out_dtype=out_dtype)
    else:
        M2 = np.kron(np.eye(B, dtype=np.float32), Lw)           # [B*Wout, B*W]
        z = fused_matmul(jnp.asarray(M2), t.reshape(B * W, C), out_dtype=out_dtype)
    return z.reshape(N, Hout, Wout, C)


def bilinear_resize(x, out_hw, out_dtype=None):
    Hout, Wout = out_hw
    N, H, W, C = x.shape
    out_dtype = x.dtype if out_dtype is None else out_dtype
    if (Hout, Wout) == (H, W):
        return x.astype(out_dtype)
    Lh = _interp_matrix(Hout, H)
    Lw = _interp_matrix(Wout, W)
    return _separable_apply(x, Lh, Lw, out_dtype)


def adaptive_avg_pool(x, out_size):
    Lh = _pool_matrix(out_size, x.shape[1])
    Lw = _pool_matrix(out_size, x.shape[2])
    return _separable_apply(x, Lh, Lw, jnp.bfloat16)


def maxpool_3x3_s2(x):
    # TODO(synk): windowed max pooling has no matmul/MXU form; lax.reduce_window glue.
    neg_inf = jnp.asarray(-jnp.inf, dtype=x.dtype)
    return jax.lax.reduce_window(x, neg_inf, jax.lax.max,
                                 (1, 3, 3, 1), (1, 2, 2, 1),
                                 ((0, 0), (1, 1), (1, 1), (0, 0)))


# ----------------------------------------------------------------------------
# Deterministic parameter construction (weights pre-reshaped to matmul layout)
# ----------------------------------------------------------------------------
class ParamFactory:
    def __init__(self, seed):
        self.key = jax.random.PRNGKey(seed)

    def _next(self):
        self.key, k = jax.random.split(self.key)
        return k

    def conv_bn(self, cin, cout, k):
        fan_in = cin * k * k
        w = jax.random.normal(self._next(), (k, k, cin, cout), jnp.float32) \
            * np.sqrt(2.0 / fan_in)
        gamma = 1.0 + 0.01 * jax.random.normal(self._next(), (cout,), jnp.float32)
        beta = 0.01 * jax.random.normal(self._next(), (cout,), jnp.float32)
        # eval-mode BN with running_mean=0, running_var=1, eps=1e-5 folded in:
        scale = gamma / jnp.sqrt(1.0 + 1e-5)
        return {'wmat': w.reshape(k * k * cin, cout).astype(jnp.bfloat16),
                'scale': scale, 'bias': beta}

    def conv(self, cin, cout, k):
        fan_in = cin * k * k
        w = jax.random.normal(self._next(), (k, k, cin, cout), jnp.float32) \
            * np.sqrt(2.0 / fan_in)
        return {'wmat': w.reshape(k * k * cin, cout).astype(jnp.bfloat16),
                'scale': jnp.ones((cout,), jnp.float32),
                'bias': jnp.zeros((cout,), jnp.float32)}


def init_icnet(num_classes, seed=42):
    pf = ParamFactory(seed)
    params = {}
    params['conv_sub1'] = [pf.conv_bn(3, 32, 3), pf.conv_bn(32, 32, 3),
                           pf.conv_bn(32, 64, 3)]
    params['layer0'] = pf.conv_bn(3, 64, 7)

    def make_layer(cin, planes, blocks):
        layer = [{'conv1': pf.conv_bn(cin, planes, 1),
                  'conv2': pf.conv_bn(planes, planes, 3),
                  'conv3': pf.conv_bn(planes, planes * 4, 1),
                  'down': pf.conv_bn(cin, planes * 4, 1)}]
        for _ in range(blocks - 1):
            layer.append({'conv1': pf.conv_bn(planes * 4, planes, 1),
                          'conv2': pf.conv_bn(planes, planes, 3),
                          'conv3': pf.conv_bn(planes, planes * 4, 1)})
        return layer

    params['layer1'] = make_layer(64, 64, 3)
    params['layer2'] = make_layer(256, 128, 4)
    params['layer3'] = make_layer(512, 256, 6)
    params['layer4'] = make_layer(1024, 512, 3)
    params['psp'] = {'stages': [pf.conv_bn(2048, 512, 1) for _ in range(4)],
                     'bottleneck': pf.conv_bn(2048 + 4 * 512, 512, 3)}
    params['conv_sub4'] = pf.conv_bn(512, 256, 1)
    params['conv_sub2'] = pf.conv_bn(512, 256, 1)
    params['ic_head'] = {
        'cff_24': {'conv_low': pf.conv_bn(256, 128, 3),
                   'conv_high': pf.conv_bn(256, 128, 1),
                   'conv_low_cls': pf.conv(128, num_classes, 1)},
        'cff_12': {'conv_low': pf.conv_bn(128, 128, 3),
                   'conv_high': pf.conv_bn(64, 128, 1),
                   'conv_low_cls': pf.conv(128, num_classes, 1)},
        'conv_cls': pf.conv(128, num_classes, 1)}
    return params


# ----------------------------------------------------------------------------
# Forward passes (NHWC activations, bf16; final logits in f32)
# ----------------------------------------------------------------------------
def bottleneck_fwd(p, x, stride, dilation):
    out = cbr(p['conv1'], x, relu=True)
    out = cbr(p['conv2'], out, stride=stride, padding=dilation,
              dilation=dilation, relu=True)
    if 'down' in p:
        identity = cbr(p['down'], x, stride=stride, relu=False)
    else:
        identity = x
    # residual add + relu fused into the conv3 matmul epilogue
    return cbr(p['conv3'], out, relu=True, residual=identity)


def run_layer(layer, x, stride, dilation):
    for bi, p in enumerate(layer):
        s = stride if bi == 0 else 1
        x = bottleneck_fwd(p, x, s, dilation)
    return x


def psp_forward(p, feats):
    h, w = feats.shape[1], feats.shape[2]
    priors = []
    for size, sp in zip((1, 2, 3, 6), p['stages']):
        y = adaptive_avg_pool(feats, size)
        y = cbr(sp, y, relu=False)
        y = bilinear_resize(y, (h, w))
        priors.append(y)
    priors.append(feats)
    y = jnp.concatenate(priors, axis=-1)
    y = cbr(p['bottleneck'], y, padding=1, relu=True)
    # Dropout2d(0.1) -> identity in eval mode
    return y


def cff_forward(p, x_low, x_high):
    x_low = bilinear_resize(x_low, (x_high.shape[1], x_high.shape[2]))
    x_low = cbr(p['conv_low'], x_low, padding=2, dilation=2, relu=False)
    # relu(conv_high(x_high) + x_low) fused into the conv_high matmul epilogue
    x = cbr(p['conv_high'], x_high, relu=True, residual=x_low)
    x_low_cls = cbr(p['conv_low_cls'], x_low, relu=False, out_dtype=jnp.float32)
    return x, x_low_cls


def ic_head_forward(p, x_sub1, x_sub2, x_sub4):
    outputs = []
    x_cff_24, x_24_cls = cff_forward(p['cff_24'], x_sub4, x_sub2)
    outputs.append(x_24_cls)
    x_cff_12, x_12_cls = cff_forward(p['cff_12'], x_cff_24, x_sub1)
    outputs.append(x_12_cls)
    h, w = x_cff_12.shape[1], x_cff_12.shape[2]
    up_x2 = bilinear_resize(x_cff_12, (2 * h, 2 * w))
    up_x2 = cbr(p['conv_cls'], up_x2, relu=False, out_dtype=jnp.float32)
    outputs.append(up_x2)
    up_x8 = bilinear_resize(up_x2, (4 * up_x2.shape[1], 4 * up_x2.shape[2]),
                            out_dtype=jnp.float32)
    return up_x8, outputs


def icnet_forward(params, x_nchw):
    # NCHW (PyTorch interface) -> NHWC bf16, once.
    x = jnp.transpose(x_nchw, (0, 2, 3, 1)).astype(jnp.bfloat16)
    H, W = x.shape[1], x.shape[2]
    # sub-1 branch
    y = x
    for p in params['conv_sub1']:
        y = cbr(p, y, stride=2, padding=1, relu=True)
    x_sub1_out = y
    # sub-2 branch (backbone at half resolution)
    x_sub2 = bilinear_resize(x, (H // 2, W // 2))
    y = cbr(params['layer0'], x_sub2, stride=2, padding=3, relu=True)
    y = maxpool_3x3_s2(y)
    y = run_layer(params['layer1'], y, stride=1, dilation=1)
    x_sub2_out = run_layer(params['layer2'], y, stride=2, dilation=1)
    # sub-4 branch (variant 'D': layer3 dil=2, layer4 dil=4, stride 1)
    x_sub4 = bilinear_resize(x_sub2_out,
                             (x_sub2_out.shape[1] // 2, x_sub2_out.shape[2] // 2))
    y = run_layer(params['layer3'], x_sub4, stride=1, dilation=2)
    y = run_layer(params['layer4'], y, stride=1, dilation=4)
    x_sub4_out = psp_forward(params['psp'], y)
    x_sub4_out = cbr(params['conv_sub4'], x_sub4_out, relu=True)
    x_sub2_out = cbr(params['conv_sub2'], x_sub2_out, relu=True)
    # IC head
    up_x8, aux = ic_head_forward(params['ic_head'],
                                 x_sub1_out, x_sub2_out, x_sub4_out)
    # final F.upsample to input size (eval path)
    out = bilinear_resize(up_x8, (H, W), out_dtype=jnp.float32)
    # back to NCHW for the PyTorch-compatible interface (tiny tensors)
    to_nchw = lambda t: jnp.transpose(t, (0, 3, 1, 2))
    return to_nchw(out), [to_nchw(a) for a in aux]


# ----------------------------------------------------------------------------
if __name__ == "__main__":
    num_classes = 8
    x = jax.random.normal(jax.random.PRNGKey(0), (2, 3, 64, 64), jnp.float32)

    # self-check of the fused Pallas matmul kernel
    a = jax.random.normal(jax.random.PRNGKey(1), (37, 70), jnp.float32)
    b = jax.random.normal(jax.random.PRNGKey(2), (70, 19), jnp.float32)
    # f32 operand path (tight tolerance)
    err = jnp.max(jnp.abs(fused_matmul(a, b, out_dtype=jnp.float32,
                                       operand_dtype=jnp.float32) - jnp.dot(a, b)))
    assert float(err) < 1e-3, f"f32 matmul kernel mismatch: {err}"
    # bf16 operand path against a bf16 reference
    ref_bf = jnp.dot(a.astype(jnp.bfloat16), b.astype(jnp.bfloat16),
                     preferred_element_type=jnp.float32)
    err = jnp.max(jnp.abs(fused_matmul(a, b, out_dtype=jnp.float32) - ref_bf))
    assert float(err) < 5e-2, f"bf16 matmul kernel mismatch: {err}"
    # fused residual + relu epilogue
    r = jax.random.normal(jax.random.PRNGKey(3), (37, 19), jnp.float32)
    out_res = fused_matmul(a, b, relu=True, residual=r, out_dtype=jnp.float32)
    ref_res = jnp.maximum(ref_bf + r.astype(jnp.bfloat16).astype(jnp.float32), 0.0)
    err = jnp.max(jnp.abs(out_res - ref_res))
    assert float(err) < 5e-2, f"residual epilogue mismatch: {err}"

    params = init_icnet(num_classes, seed=42)
    fwd = jax.jit(icnet_forward)
    out, aux = fwd(params, x)
    out = jax.block_until_ready(out)

    assert out.shape == (2, num_classes, 64, 64), out.shape
    assert out.dtype == jnp.float32
    assert aux[0].shape == (2, num_classes, 4, 4)
    assert aux[1].shape == (2, num_classes, 8, 8)
    assert aux[2].shape == (2, num_classes, 16, 16)
    assert bool(jnp.all(jnp.isfinite(out)))
    print("KERNEL_OK")
</pallas_src>

<mosaic_0001>
module attributes {stable_mosaic.version = 11 : i64} {
  func.func @_mm_bn_act_kernel(%arg0: i32, %arg1: i32, %arg2: i32, %arg3: memref<48x128xf32, #tpu.memory_space<vmem>>, %arg4: memref<128x128xf32, #tpu.memory_space<vmem>>, %arg5: memref<1x128xf32, #tpu.memory_space<vmem>>, %arg6: memref<1x128xf32, #tpu.memory_space<vmem>>, %arg7: memref<48x128xf32, #tpu.memory_space<vmem>>, %arg8: memref<48x128xf32, #tpu.memory_space<vmem>>) attributes {dimension_semantics = [#tpu.dimension_semantics<parallel>, #tpu.dimension_semantics<parallel>, #tpu.dimension_semantics<arbitrary>], iteration_bounds = array<i64: 1, 1, 1>, scalar_prefetch = 0 : i64, scratch_operands = 1 : i64, tpu.core_type = #tpu.core_type<tc>, window_params = [{transform_indices = @transform_0, window_bounds = array<i64: 48, 128>}, {transform_indices = @transform_1, window_bounds = array<i64: 128, 128>}, {transform_indices = @transform_2, window_bounds = array<i64: 1, 128>}, {transform_indices = @transform_3, window_bounds = array<i64: 1, 128>}, {transform_indices = @transform_4, window_bounds = array<i64: 48, 128>}]} {
    %c0_i32 = arith.constant 0 : i32
    %0 = arith.cmpi eq, %arg2, %c0_i32 : i32
    %1 = arith.extui %0 : i1 to i32
    %c0_i32_0 = arith.constant 0 : i32
    %2 = arith.cmpi ne, %1, %c0_i32_0 : i32
    scf.if %2 {
      %cst_10 = arith.constant 0.000000e+00 : f32
      %12 = vector.broadcast %cst_10 : f32 to vector<48x128xf32>
      %c0_11 = arith.constant 0 : index
      %c0_12 = arith.constant 0 : index
      %13 = vector.load %arg8[%c0_11, %c0_12] : memref<48x128xf32, #tpu.memory_space<vmem>>, vector<48x128xf32>
      tpu.vector_store %arg8[%c0_11, %c0_12], %12 {strides = array<i32>} : memref<48x128xf32, #tpu.memory_space<vmem>>, vector<48x128xf32>,
    } else {
    }
    %c0 = arith.constant 0 : index
    %c0_1 = arith.constant 0 : index
    %3 = vector.load %arg8[%c0, %c0_1] : memref<48x128xf32, #tpu.memory_space<vmem>>, vector<48x128xf32>
    %c0_2 = arith.constant 0 : index
    %c0_3 = arith.constant 0 : index
    %4 = vector.load %arg3[%c0_2, %c0_3] : memref<48x128xf32, #tpu.memory_space<vmem>>, vector<48x128xf32>
    %c0_4 = arith.constant 0 : index
    %c0_5 = arith.constant 0 : index
    %5 = vector.load %arg4[%c0_4, %c0_5] : memref<128x128xf32, #tpu.memory_space<vmem>>, vector<128x128xf32>
    %cst = arith.constant dense<0.000000e+00> : vector<48x128xf32>
    %6 = tpu.matmul %4, %5, %cst {dimension_numbers = #tpu.dot_dimension_numbers<[1], [0], [0], [1], [0, 0, 1, 1], [], []>} : vector<48x128xf32>, vector<128x128xf32>, vector<48x128xf32> -> vector<48x128xf32>
    %7 = arith.addf %3, %6 : vector<48x128xf32>
    %c0_6 = arith.constant 0 : index
    %c0_7 = arith.constant 0 : index
    %8 = vector.load %arg8[%c0_6, %c0_7] : memref<48x128xf32, #tpu.memory_space<vmem>>, vector<48x128xf32>
    tpu.vector_store %arg8[%c0_6, %c0_7], %7 {strides = array<i32>} : memref<48x128xf32, #tpu.memory_space<vmem>>, vector<48x128xf32>,
    %c0_i32_8 = arith.constant 0 : i32
    %9 = arith.cmpi eq, %arg2, %c0_i32_8 : i32
    %10 = arith.extui %9 : i1 to i32
    %c0_i32_9 = arith.constant 0 : i32
    %11 = arith.cmpi ne, %10, %c0_i32_9 : i32
    scf.if %11 {
      %c0_10 = arith.constant 0 : index
      %c0_11 = arith.constant 0 : index
      %12 = vector.load %arg8[%c0_10, %c0_11] : memref<48x128xf32, #tpu.memory_space<vmem>>, vector<48x128xf32>
      %c0_12 = arith.constant 0 : index
      %c0_13 = arith.constant 0 : index
      %13 = vector.load %arg5[%c0_12, %c0_13] : memref<1x128xf32, #tpu.memory_space<vmem>>, vector<1x128xf32>
      %14 = vector.broadcast %13 : vector<1x128xf32> to vector<48x128xf32>
      %15 = arith.mulf %12, %14 : vector<48x128xf32>
      %c0_14 = arith.constant 0 : index
      %c0_15 = arith.constant 0 : index
      %16 = vector.load %arg6[%c0_14, %c0_15] : memref<1x128xf32, #tpu.memory_space<vmem>>, vector<1x128xf32>
      %17 = vector.broadcast %16 : vector<1x128xf32> to vector<48x128xf32>
      %18 = arith.addf %15, %17 : vector<48x128xf32>
      %c0_16 = arith.constant 0 : index
      %c0_17 = arith.constant 0 : index
      %19 = vector.load %arg7[%c0_16, %c0_17] : memref<48x128xf32, #tpu.memory_space<vmem>>, vector<48x128xf32>
      tpu.vector_store %arg7[%c0_16, %c0_17], %18 {strides = array<i32>} : memref<48x128xf32, #tpu.memory_space<vmem>>, vector<48x128xf32>,
    } else {
    }
    return
  }
  func.func @transform_0(%arg0: i32, %arg1: i32, %arg2: i32) -> (i32, i32) {
    %c0_i32 = arith.constant 0 : i32
    return %arg0, %arg2 : i32, i32
  }
  func.func @transform_1(%arg0: i32, %arg1: i32, %arg2: i32) -> (i32, i32) {
    %c0_i32 = arith.constant 0 : i32
    return %arg2, %arg1 : i32, i32
  }
  func.func @transform_2(%arg0: i32, %arg1: i32, %arg2: i32) -> (i32, i32) {
    %c0_i32 = arith.constant 0 : i32
    %c0_i32_0 = arith.constant 0 : i32
    return %c0_i32, %arg1 : i32, i32
  }
  func.func @transform_3(%arg0: i32, %arg1: i32, %arg2: i32) -> (i32, i32) {
    %c0_i32 = arith.constant 0 : i32
    %c0_i32_0 = arith.constant 0 : i32
    return %c0_i32, %arg1 : i32, i32
  }
  func.func @transform_4(%arg0: i32, %arg1: i32, %arg2: i32) -> (i32, i32) {
    %c0_i32 = arith.constant 0 : i32
    return %arg0, %arg1 : i32, i32
  }
}

</mosaic_0001>

<llo_original>
// kernel: tpu_custom_call.1
$region0: #{tpu_custom_call.1}
  #allocation0 [shape = 'u32[]', space=smem, size = 0x4, offset = 0x4, fixed_abs, tag = 'smem constant byte address 0x4 - core index']
  #allocation1 [shape = 'u32[144,128]{1,0:T(1,128)}', space=vmem, size = 0x12000, scoped, tag = 'internal scratch']
  #allocation2 [shape = 'f32[48,128]{1,0:T(8,128)}', space=vmem, size = 0x6000, scoped, tag = 'scratch operand']
  %s0 = inlined_call_operand.hbm [shape: f32[48,128], index: 0, kind: input, shape index: {}]
  %s1 = inlined_call_operand.hbm [shape: f32[128,128], index: 1, kind: input, shape index: {}]
  %s2 = inlined_call_operand.hbm [shape: f32[1,128], index: 2, kind: input, shape index: {}]
  %s3 = inlined_call_operand.hbm [shape: f32[1,128], index: 3, kind: input, shape index: {}]
  %s4 = inlined_call_operand.hbm [shape: f32[48,128], index: 4, kind: output, shape index: {}]
  %s5 = sld [smem:[#allocation0]]
  $region50: #{tpu_custom_call.1} parent=0
    _
  %s7 = ssub.s32 1, %s5
  %s8 = scalar_select 0, %s7, %s5
  $region1: #{tpu_custom_call.1} parent=0
    #allocation3 [shape = 'u8[24576]{0}', space=vmem, size = 0x6000, scoped, tag = 'input window, operand 0, single buffered']
    #allocation4 [shape = 's32[1]{0}', space=sflag, size = 0x4, scoped, tag = 'scoped memory for tpu_custom_call.1']
    #allocation5 [shape = 's32[1]{0}', space=sflag, size = 0x4, scoped, tag = 'scoped memory for tpu_custom_call.1']
    #allocation6 [shape = 'u8[65536]{0}', space=vmem, size = 0x10000, scoped, tag = 'input window, operand 1, single buffered']
    #allocation7 [shape = 's32[1]{0}', space=sflag, size = 0x4, scoped, tag = 'scoped memory for tpu_custom_call.1']
    #allocation8 [shape = 'u8[512]{0}', space=vmem, size = 0x400, scoped, tag = 'input window, operand 2, single buffered']
    #allocation9 [shape = 'u8[512]{0}', space=vmem, size = 0x400, scoped, tag = 'input window, operand 3, single buffered']
    #allocation10 [shape = 's32[1]{0}', space=sflag, size = 0x4, scoped, tag = 'scoped memory for tpu_custom_call.1']
    #allocation11 [shape = 'u8[24576]{0}', space=vmem, size = 0x6000, scoped, tag = 'output window, operand 0, single buffered']
    %9 = vsyncpa [#allocation4], 0
    %10 = vsyncpa [#allocation7], 0
    %11 = vsyncpa [#allocation10], 0
    %12 = vsyncpa [#allocation5], 0
    // Predicated region
    $region2: #{tpu_custom_call.1} parent=1 // pred_check
      _
    $region3: #{tpu_custom_call.1} parent=1 // pred_check_branch
      %14 = sbr.rel (0) target = $region5
    $region4: #{tpu_custom_call.1} parent=1 // pred_region
      %s16 = ssub.s32 768, 768
      %17 = vsyncadd [#allocation4], %s16
      %s18 = sshll.u32 [#allocation3], 4
      %s19 = int_to_ptr.vmem [resolvable:$true] %s18
      %24 = dma.hbm_to_vmem [thread:$0]  %s0, 768, %s19, [#allocation4], 128, 128, 8
    $region5: #{tpu_custom_call.1} parent=1 // pred_fallthru
      _
    // Predicated region
    $region6: #{tpu_custom_call.1} parent=1 // pred_check
      _
    $region7: #{tpu_custom_call.1} parent=1 // pred_check_branch
      %26 = sbr.rel (0) target = $region9
    $region8: #{tpu_custom_call.1} parent=1 // pred_region
      %s28 = ssub.s32 2048, 2048
      %29 = vsyncadd [#allocation7], %s28
      %s30 = sshll.u32 [#allocation6], 4
      %s31 = int_to_ptr.vmem [resolvable:$true] %s30
      %36 = dma.hbm_to_vmem [thread:$0]  %s1, 2048, %s31, [#allocation7], 128, 128, 8
    $region9: #{tpu_custom_call.1} parent=1 // pred_fallthru
      _
    // Predicated region
    $region10: #{tpu_custom_call.1} parent=1 // pred_check
      _
    $region11: #{tpu_custom_call.1} parent=1 // pred_check_branch
      %38 = sbr.rel (0) target = $region13
    $region12: #{tpu_custom_call.1} parent=1 // pred_region
      %s40 = ssub.s32 16, 16
      %41 = vsyncadd [#allocation7], %s40
      %s43 = sshll.u32 [#allocation8], 4
      %s44 = int_to_ptr.vmem [resolvable:$true] %s43
      %46 = dma.hbm_to_vmem [thread:$0]  %s2, 16, %s44, [#allocation7]
    $region13: #{tpu_custom_call.1} parent=1 // pred_fallthru
      _
    // Predicated region
    $region14: #{tpu_custom_call.1} parent=1 // pred_check
      _
    $region15: #{tpu_custom_call.1} parent=1 // pred_check_branch
      %48 = sbr.rel (0) target = $region17
    $region16: #{tpu_custom_call.1} parent=1 // pred_region
      %s50 = ssub.s32 16, 16
      %51 = vsyncadd [#allocation10], %s50
      %s53 = sshll.u32 [#allocation9], 4
      %s54 = int_to_ptr.vmem [resolvable:$true] %s53
      %56 = dma.hbm_to_vmem [thread:$0]  %s3, 16, %s54, [#allocation10]
    $region17: #{tpu_custom_call.1} parent=1 // pred_fallthru
      _
    // Predicated region
    $region18: #{tpu_custom_call.1} parent=1 // pred_check
      _
    $region19: #{tpu_custom_call.1} parent=1 // pred_check_branch
      %58 = sbr.rel (0) target = $region21
    $region20: #{tpu_custom_call.1} parent=1 // pred_region
      %59 = dma.done [#allocation4], 768
    $region21: #{tpu_custom_call.1} parent=1 // pred_fallthru
      _
    // Predicated region
    $region22: #{tpu_custom_call.1} parent=1 // pred_check
      _
    $region23: #{tpu_custom_call.1} parent=1 // pred_check_branch
      %61 = sbr.rel (0) target = $region25
    $region24: #{tpu_custom_call.1} parent=1 // pred_region
      %62 = dma.done [#allocation7], 2048
    $region25: #{tpu_custom_call.1} parent=1 // pred_fallthru
      _
    // Predicated region
    $region26: #{tpu_custom_call.1} parent=1 // pred_check
      _
    $region27: #{tpu_custom_call.1} parent=1 // pred_check_branch
      %64 = sbr.rel (0) target = $region29
    $region28: #{tpu_custom_call.1} parent=1 // pred_region
      %65 = dma.done [#allocation7], 16
    $region29: #{tpu_custom_call.1} parent=1 // pred_fallthru
      _
    // Predicated region
    $region30: #{tpu_custom_call.1} parent=1 // pred_check
      _
    $region31: #{tpu_custom_call.1} parent=1 // pred_check_branch
      %67 = sbr.rel (0) target = $region33
    $region32: #{tpu_custom_call.1} parent=1 // pred_region
      %68 = dma.done [#allocation10], 16
    $region33: #{tpu_custom_call.1} parent=1 // pred_fallthru
      _
    %p69 = scmp.eq.s32.totalorder 0, 0
    // Predicated region
    $region34: #{tpu_custom_call.1} parent=1 // pred_check
      %p70 = pneg %p69
    $region35: #{tpu_custom_call.1} parent=1 // pred_check_branch
      %72 = sbr.rel (%p70) target = $region37
    $region36: #{tpu_custom_call.1} parent=1 // pred_region
      %73 = vst [vmem:[#allocation2] sm:$0xff] 0.0
      %74 = vst [vmem:[#allocation2 + $0x8] sm:$0xff] 0.0
      %75 = vst [vmem:[#allocation2 + $0x10] sm:$0xff] 0.0
      %76 = vst [vmem:[#allocation2 + $0x18] sm:$0xff] 0.0
      %77 = vst [vmem:[#allocation2 + $0x20] sm:$0xff] 0.0
      %78 = vst [vmem:[#allocation2 + $0x28] sm:$0xff] 0.0
    $region37: #{tpu_custom_call.1} parent=1 // pred_fallthru
      _
    %v79 = vld [vmem:[#allocation2] sm:$0xff]
    %v80 = vld [vmem:[#allocation2 + $0x8] sm:$0xff]
    %v81 = vld [vmem:[#allocation2 + $0x10] sm:$0xff]
    %v82 = vld [vmem:[#allocation2 + $0x18] sm:$0xff]
    %v83 = vld [vmem:[#allocation2 + $0x20] sm:$0xff]
    %v84 = vld [vmem:[#allocation2 + $0x28] sm:$0xff]
    %v85 = vld [vmem:[#allocation3] sm:$0xff]
    %v86 = vld [vmem:[#allocation3 + $0x8] sm:$0xff]
    %v87 = vld [vmem:[#allocation3 + $0x10] sm:$0xff]
    %v88 = vld [vmem:[#allocation3 + $0x18] sm:$0xff]
    %v89 = vld [vmem:[#allocation3 + $0x20] sm:$0xff]
    %v90 = vld [vmem:[#allocation3 + $0x28] sm:$0xff]
    %v91 = vld [vmem:[#allocation6] sm:$0xff]
    %v92 = vld [vmem:[#allocation6 + $0x8] sm:$0xff]
    %v93 = vld [vmem:[#allocation6 + $0x10] sm:$0xff]
    %v94 = vld [vmem:[#allocation6 + $0x18] sm:$0xff]
    %v95 = vld [vmem:[#allocation6 + $0x20] sm:$0xff]
    %v96 = vld [vmem:[#allocation6 + $0x28] sm:$0xff]
    %v97 = vld [vmem:[#allocation6 + $0x30] sm:$0xff]
    %v98 = vld [vmem:[#allocation6 + $0x38] sm:$0xff]
    %v99 = vld [vmem:[#allocation6 + $0x40] sm:$0xff]
    %v100 = vld [vmem:[#allocation6 + $0x48] sm:$0xff]
    %v101 = vld [vmem:[#allocation6 + $0x50] sm:$0xff]
    %v102 = vld [vmem:[#allocation6 + $0x58] sm:$0xff]
    %v103 = vld [vmem:[#allocation6 + $0x60] sm:$0xff]
    %v104 = vld [vmem:[#allocation6 + $0x68] sm:$0xff]
    %v105 = vld [vmem:[#allocation6 + $0x70] sm:$0xff]
    %v106 = vld [vmem:[#allocation6 + $0x78] sm:$0xff]
    %107 = vmatprep.subr.mxu0 0.0
    %108 = vmatpush1.msra.mxu0 %v91
    %109 = vmatprep.subr.mxu0 0.0
    %110 = vmatpush1.msra.mxu0 %v92
    %111 = vmatprep.subr.mxu0 0.0
    %112 = vmatpush1.msra.mxu0 %v93
    %113 = vmatprep.subr.mxu0 0.0
    %114 = vmatpush1.msra.mxu0 %v94
    %115 = vmatprep.subr.mxu0 0.0
    %116 = vmatpush1.msra.mxu0 %v95
    %117 = vmatprep.subr.mxu0 0.0
    %118 = vmatpush1.msra.mxu0 %v96
    %119 = vmatprep.subr.mxu0 0.0
    %120 = vmatpush1.msra.mxu0 %v97
    %121 = vmatprep.subr.mxu0 0.0
    %122 = vmatpush1.msra.mxu0 %v98
    %123 = vmatprep.subr.mxu0 0.0
    %124 = vmatpush1.msra.mxu0 %v99
    %125 = vmatprep.subr.mxu0 0.0
    %126 = vmatpush1.msra.mxu0 %v100
    %127 = vmatprep.subr.mxu0 0.0
    %128 = vmatpush1.msra.mxu0 %v101
    %129 = vmatprep.subr.mxu0 0.0
    %130 = vmatpush1.msra.mxu0 %v102
    %131 = vmatprep.subr.mxu0 0.0
    %132 = vmatpush1.msra.mxu0 %v103
    %133 = vmatprep.subr.mxu0 0.0
    %134 = vmatpush1.msra.mxu0 %v104
    %135 = vmatprep.subr.mxu0 0.0
    %136 = vmatpush1.msra.mxu0 %v105
    %137 = vmatprep.subr.mxu0 0.0
    %138 = vmatpush1.msra.mxu0 %v106
    %139 = vmatprep.subr.mxu0 0.0
    %140 = vmatpush1.msra.mxu0 0.0
    %141 = vmatprep.subr.mxu0 0.0
    %142 = vmatpush1.msra.mxu0 0.0
    %143 = vmatprep.subr.mxu0 0.0
    %144 = vmatpush1.msra.mxu0 0.0
    %145 = vmatprep.subr.mxu0 0.0
    %146 = vmatpush1.msra.mxu0 0.0
    %147 = vmatprep.subr.mxu0 0.0
    %148 = vmatpush1.msra.mxu0 0.0
    %149 = vmatprep.subr.mxu0 0.0
    %150 = vmatpush1.msra.mxu0 0.0
    %151 = vmatprep.subr.mxu0 0.0
    %152 = vmatpush1.msra.mxu0 0.0
    %153 = vmatprep.subr.mxu0 0.0
    %154 = vmatpush1.msra.mxu0 0.0
    %155 = vmatprep.subr.mxu0 0.0
    %156 = vmatpush1.msra.mxu0 0.0
    %157 = vmatprep.subr.mxu0 0.0
    %158 = vmatpush1.msra.mxu0 0.0
    %159 = vmatprep.subr.mxu0 0.0
    %160 = vmatpush1.msra.mxu0 0.0
    %161 = vmatprep.subr.mxu0 0.0
    %162 = vmatpush1.msra.mxu0 0.0
    %163 = vmatprep.subr.mxu0 0.0
    %164 = vmatpush1.msra.mxu0 0.0
    %165 = vmatprep.subr.mxu0 0.0
    %166 = vmatpush1.msra.mxu0 0.0
    %167 = vmatprep.subr.mxu0 0.0
    %168 = vmatpush1.msra.mxu0 0.0
    %169 = vmatprep.subr.mxu0 0.0
    %170 = vmatpush1.msra.mxu0 0.0
    %171 = vmatprep.mubr.f32.mxu0 0.0
    %172 = vmatmul.mubr.f32.gmra.mrb[0].mxu0 %v85
    %v173 = vpop.f32.mrb[0].mxu0
    %v174 = vadd.f32 0.0, %v173
    %v175 = vpop.f32.mrb[0].mxu0
    %176 = vmatprep.mubr.f32.mxu0 0.0
    %177 = vmatmul.mubr.f32.gmra.mrb[0].mxu0 %v86
    %v178 = vpop.f32.mrb[0].mxu0
    %v179 = vadd.f32 0.0, %v178
    %v180 = vpop.f32.mrb[0].mxu0
    %181 = vmatprep.mubr.f32.mxu0 0.0
    %182 = vmatmul.mubr.f32.gmra.mrb[0].mxu0 %v87
    %v183 = vpop.f32.mrb[0].mxu0
    %v184 = vadd.f32 0.0, %v183
    %v185 = vpop.f32.mrb[0].mxu0
    %186 = vmatprep.mubr.f32.mxu0 0.0
    %187 = vmatmul.mubr.f32.gmra.mrb[0].mxu0 %v88
    %v188 = vpop.f32.mrb[0].mxu0
    %v189 = vadd.f32 0.0, %v188
    %v190 = vpop.f32.mrb[0].mxu0
    %191 = vmatprep.mubr.f32.mxu0 0.0
    %192 = vmatmul.mubr.f32.gmra.mrb[0].mxu0 %v89
    %v193 = vpop.f32.mrb[0].mxu0
    %v194 = vadd.f32 0.0, %v193
    %v195 = vpop.f32.mrb[0].mxu0
    %196 = vmatprep.mubr.f32.mxu0 0.0
    %197 = vmatmul.mubr.f32.gmra.mrb[0].mxu0 %v90
    %v198 = vpop.f32.mrb[0].mxu0
    %v199 = vadd.f32 0.0, %v198
    %v200 = vpop.f32.mrb[0].mxu0
    %201 = vdwg.mxu0
    %v202 = vadd.f32 %v79, %v174
    %v203 = vadd.f32 %v80, %v179
    %v204 = vadd.f32 %v81, %v184
    %v205 = vadd.f32 %v82, %v189
    %v206 = vadd.f32 %v83, %v194
    %v207 = vadd.f32 %v84, %v199
    %208 = vst [vmem:[#allocation2] sm:$0xff] %v202
    %209 = vst [vmem:[#allocation2 + $0x8] sm:$0xff] %v203
    %210 = vst [vmem:[#allocation2 + $0x10] sm:$0xff] %v204
    %211 = vst [vmem:[#allocation2 + $0x18] sm:$0xff] %v205
    %212 = vst [vmem:[#allocation2 + $0x20] sm:$0xff] %v206
    %213 = vst [vmem:[#allocation2 + $0x28] sm:$0xff] %v207
    // Predicated region
    $region38: #{tpu_custom_call.1} parent=1 // pred_check
      %p214 = pneg %p69
    $region39: #{tpu_custom_call.1} parent=1 // pred_check_branch
      %216 = sbr.rel (%p214) target = $region41
    $region40: #{tpu_custom_call.1} parent=1 // pred_region
      %v217 = vld [vmem:[#allocation2] sm:$0xff]
      %v218 = vld [vmem:[#allocation2 + $0x8] sm:$0xff]
      %v219 = vld [vmem:[#allocation2 + $0x10] sm:$0xff]
      %v220 = vld [vmem:[#allocation2 + $0x18] sm:$0xff]
      %v221 = vld [vmem:[#allocation2 + $0x20] sm:$0xff]
      %v222 = vld [vmem:[#allocation2 + $0x28] sm:$0xff]
      %v223 = vld [vmem:[#allocation8] sm:$0x1]
      %v225 = vlaneseq
      %v226 = vshrl.u32 %v225, 7
      %v227 = vsub.s32 0, %v226
      %v228 = vrot.slane %v223, %v227
      %v230 = vmul.f32 %v217, %v228
      %v231 = vmul.f32 %v218, %v228
      %v232 = vmul.f32 %v219, %v228
      %v233 = vmul.f32 %v220, %v228
      %v234 = vmul.f32 %v221, %v228
      %v235 = vmul.f32 %v222, %v228
      %v236 = vld [vmem:[#allocation9] sm:$0x1]
      %v238 = vlaneseq
      %v239 = vshrl.u32 %v238, 7
      %v240 = vsub.s32 0, %v239
      %v241 = vrot.slane %v236, %v240
      %v243 = vadd.f32 %v230, %v241
      %v244 = vadd.f32 %v231, %v241
      %v245 = vadd.f32 %v232, %v241
      %v246 = vadd.f32 %v233, %v241
      %v247 = vadd.f32 %v234, %v241
      %v248 = vadd.f32 %v235, %v241
      %249 = vst [vmem:[#allocation11] sm:$0xff] %v243
      %250 = vst [vmem:[#allocation11 + $0x8] sm:$0xff] %v244
      %251 = vst [vmem:[#allocation11 + $0x10] sm:$0xff] %v245
      %252 = vst [vmem:[#allocation11 + $0x18] sm:$0xff] %v246
      %253 = vst [vmem:[#allocation11 + $0x20] sm:$0xff] %v247
      %254 = vst [vmem:[#allocation11 + $0x28] sm:$0xff] %v248
    $region41: #{tpu_custom_call.1} parent=1 // pred_fallthru
      _
    // Predicated region
    $region42: #{tpu_custom_call.1} parent=1 // pred_check
      _
    $region43: #{tpu_custom_call.1} parent=1 // pred_check_branch
      %256 = sbr.rel (0) target = $region45
    $region44: #{tpu_custom_call.1} parent=1 // pred_region
      %s258 = ssub.s32 768, 768
      %259 = vsyncadd [#allocation5], %s258
      %s260 = sshll.u32 [#allocation11], 4
      %s261 = int_to_ptr.vmem [resolvable:$true] %s260
      %266 = dma.vmem_to_hbm [thread:$0]  %s261, 768, %s4, [#allocation5], 128, 128, 8
    $region45: #{tpu_custom_call.1} parent=1 // pred_fallthru
      _
    // Predicated region
    $region46: #{tpu_custom_call.1} parent=1 // pred_check
      _
    $region47: #{tpu_custom_call.1} parent=1 // pred_check_branch
      %268 = sbr.rel (0) target = $region49
    $region48: #{tpu_custom_call.1} parent=1 // pred_region
      %269 = dma.done [#allocation5], 768
    $region49: #{tpu_custom_call.1} parent=1 // pred_fallthru
      _
    %270 = vsyncpa [#allocation4], 1
    %271 = vsyncpa [#allocation7], 1
    %272 = vsyncpa [#allocation10], 1
    %273 = vsyncpa [#allocation5], 1

</llo_original>
